<compile_context>
chip_gen: v6e
topology: v6e:2x2x1
jax: 0.10.0
libtpu: 0.0.40
codegen_flags: <defaults>
</compile_context>

<pallas_src>
import jax
import jax.numpy as jnp
from jax.experimental import pallas as pl
from jax.experimental.pallas import tpu as pltpu

LATENT_DIM = 32
HIDDEN = (64, 128, 256, 512)
BN_EPS = 1e-5
LRELU_SLOPE = 0.2

ROW_TILE = 2048                      # rows per grid step (multiple of 8)
VMEM_LIMIT = 48 * 1024 * 1024        # explicit scoped-VMEM limit (safe on v5e/v6e/v7x)


def _round_up(n, m):
    return ((n + m - 1) // m) * m


def _choose_tiling(n):
    tile = min(ROW_TILE, _round_up(n, 8))
    n_pad = _round_up(n, tile)
    return tile, n_pad


# ---------------------------------------------------------------------------
# Kernels
# ---------------------------------------------------------------------------
def _input_stats_kernel(x_ref, sum_ref, sq_ref):
    """Per-channel sum / sum-of-squares of the input, accumulated over row tiles.
    Zero-padded rows contribute 0 to both sums, so no masking is needed here."""
    @pl.when(pl.program_id(0) == 0)
    def _init():
        sum_ref[...] = jnp.zeros_like(sum_ref)
        sq_ref[...] = jnp.zeros_like(sq_ref)

    h = x_ref[...]
    sum_ref[...] += jnp.sum(h, axis=0, keepdims=True)
    sq_ref[...] += jnp.sum(h * h, axis=0, keepdims=True)


def _make_apply_kernel(tile, n_valid, needs_mask, final):
    """BN-folded conv1x1 (h @ W' + b') + activation.

    Non-final blocks: LeakyReLU, write bf16 activations, and accumulate the
    per-channel sum / sum-of-squares of the output (used to fold the next BN).
    Final block: Tanh, f32 output, no stats (row tiles fully independent).
    """
    def kernel(h_ref, w_ref, b_ref, o_ref, *stat_refs):
        a = jnp.dot(h_ref[...].astype(jnp.bfloat16), w_ref[...],
                    preferred_element_type=jnp.float32) + b_ref[...]
        if final:
            o_ref[...] = jnp.tanh(a).astype(o_ref.dtype)
            return

        sum_ref, sq_ref = stat_refs

        @pl.when(pl.program_id(0) == 0)
        def _init():
            sum_ref[...] = jnp.zeros_like(sum_ref)
            sq_ref[...] = jnp.zeros_like(sq_ref)

        a = jnp.where(a > 0.0, a, LRELU_SLOPE * a)          # LeakyReLU(0.2), f32
        if needs_mask:
            # Zero out padded rows so they contribute nothing to the next layer's
            # batch statistics (the fold divides by the true row count).
            rows = (pl.program_id(0) * tile
                    + jax.lax.broadcasted_iota(jnp.int32, (tile, 1), 0))
            a = jnp.where(rows < n_valid, a, 0.0)

        o_ref[...] = a.astype(o_ref.dtype)                   # bf16 activation store
        sum_ref[...] += jnp.sum(a, axis=0, keepdims=True)
        sq_ref[...] += jnp.sum(a * a, axis=0, keepdims=True)

    return kernel


# ---------------------------------------------------------------------------
# Host-side helpers
# ---------------------------------------------------------------------------
def _fold_bn(s_sum, s_sq, n_rows, gamma, beta, w, b):
    """Fold training-mode BatchNorm into the following conv: W'=scale*W, b'=b+shift@W."""
    mu = s_sum / n_rows
    var = jnp.maximum(s_sq / n_rows - mu * mu, 0.0)   # E[x^2]-mu^2, clamped (f32)
    scale = gamma * jax.lax.rsqrt(var + BN_EPS)       # (1, C_in)
    shift = beta - mu * scale                          # (1, C_in)
    return w * jnp.transpose(scale), b + shift @ w     # (C_in, C_out), (1, C_out)


def init_params(key, latent_dim=LATENT_DIM):
    """Deterministic parameter init.  Conv weights stored as (C_in, C_out).
    (Real PyTorch checkpoints use (C_out, C_in, 1) kaiming-uniform; transpose them.)"""
    dims = (latent_dim,) + HIDDEN
    params = []
    for i in range(4):
        c_in, c_out = dims[i], dims[i + 1]
        key, kg, kb, kw, kc = jax.random.split(key, 5)
        gamma = 1.0 + 0.1 * jax.random.normal(kg, (1, c_in), jnp.float32)
        beta = 0.1 * jax.random.normal(kb, (1, c_in), jnp.float32)
        w = jax.random.normal(kw, (c_in, c_out), jnp.float32) / jnp.sqrt(c_in)
        b = 0.1 * jax.random.normal(kc, (1, c_out), jnp.float32)
        params += [gamma, beta, w, b]
    return params


def simple_conv_gen(x, params):
    """x: (B, L, latent_dim) float32 -> (B, 512, L) float32 (matches PyTorch output)."""
    B, L, C = x.shape
    n = B * L
    tile, n_pad = _choose_tiling(n)
    needs_mask = n_pad != n
    grid = (n_pad // tile,)

    h = x.reshape(n, C).astype(jnp.float32)
    if needs_mask:
        h = jnp.pad(h, ((0, n_pad - n), (0, 0)))

    cparams_acc = pltpu.CompilerParams(dimension_semantics=("arbitrary",),
                                       vmem_limit_bytes=VMEM_LIMIT)
    cparams_par = pltpu.CompilerParams(dimension_semantics=("parallel",),
                                       vmem_limit_bytes=VMEM_LIMIT)

    # Pass 0: batch statistics of the network input (needed to fold the first BN).
    s_sum, s_sq = pl.pallas_call(
        _input_stats_kernel,
        out_shape=(jax.ShapeDtypeStruct((1, C), jnp.float32),
                   jax.ShapeDtypeStruct((1, C), jnp.float32)),
        grid=grid,
        in_specs=[pl.BlockSpec((tile, C), lambda i: (i, 0))],
        out_specs=(pl.BlockSpec((1, C), lambda i: (0, 0)),
                   pl.BlockSpec((1, C), lambda i: (0, 0))),
        compiler_params=cparams_acc,
        cost_estimate=pl.CostEstimate(flops=3 * n_pad * C, transcendentals=0,
                                      bytes_accessed=n_pad * C * 4 + 2 * C * 4),
    )(h)

    h_cur = h
    dims = (C,) + HIDDEN
    out = None
    for blk in range(4):
        gamma, beta, w, b = params[4 * blk: 4 * blk + 4]
        c_in, c_out = dims[blk], dims[blk + 1]
        final = blk == 3

        # Tiny O(C_in*C_out) fold of BN into the conv, done once in XLA (f32).
        w_f, b_f = _fold_bn(s_sum, s_sq, n, gamma, beta, w, b)
        w_bf = w_f.astype(jnp.bfloat16)          # bf16 MXU operand, f32 accumulation

        out_dt = jnp.float32 if final else jnp.bfloat16
        if final:
            out_shape = jax.ShapeDtypeStruct((n_pad, c_out), out_dt)
            out_specs = pl.BlockSpec((tile, c_out), lambda i: (i, 0))
            cparams = cparams_par
        else:
            out_shape = (jax.ShapeDtypeStruct((n_pad, c_out), out_dt),
                         jax.ShapeDtypeStruct((1, c_out), jnp.float32),
                         jax.ShapeDtypeStruct((1, c_out), jnp.float32))
            out_specs = (pl.BlockSpec((tile, c_out), lambda i: (i, 0)),
                         pl.BlockSpec((1, c_out), lambda i: (0, 0)),
                         pl.BlockSpec((1, c_out), lambda i: (0, 0)))
            cparams = cparams_acc   # stats accumulator resident across row tiles

        cost = pl.CostEstimate(
            flops=2 * n_pad * c_in * c_out,
            transcendentals=n_pad * c_out if final else 0,
            bytes_accessed=(n_pad * c_in * h_cur.dtype.itemsize
                            + n_pad * c_out * jnp.dtype(out_dt).itemsize
                            + c_in * c_out * 2 + c_out * 4))

        res = pl.pallas_call(
            _make_apply_kernel(tile, n, needs_mask, final),
            out_shape=out_shape,
            grid=grid,
            in_specs=[pl.BlockSpec((tile, c_in), lambda i: (i, 0)),
                      pl.BlockSpec((c_in, c_out), lambda i: (0, 0)),
                      pl.BlockSpec((1, c_out), lambda i: (0, 0))],
            out_specs=out_specs,
            compiler_params=cparams,
            cost_estimate=cost,
        )(h_cur, w_bf, b_f)

        if final:
            out = res
        else:
            h_cur, s_sum, s_sq = res

    if needs_mask:
        out = out[:n]
    # TODO(synk): fuse this NLC->NCL transpose into the consumer (or emit (B,512,L)
    # directly when L % 128 == 0) to avoid an extra HBM round-trip of the largest tensor.
    return out.reshape(B, L, HIDDEN[-1]).transpose(0, 2, 1)


# ---------------------------------------------------------------------------
# References
# ---------------------------------------------------------------------------
def _reference_kernel_algo(x, params):
    """Pure-JAX replica of the kernel algorithm (folded BN, bf16 matmul operands,
    f32 accumulation, bf16 intermediate storage) for tight validation."""
    B, L, C = x.shape
    n = B * L
    h_stat = x.reshape(n, C).astype(jnp.float32)   # source of batch statistics
    h_in = h_stat                                   # matmul input
    for blk in range(4):
        gamma, beta, w, b = params[4 * blk: 4 * blk + 4]
        mu = jnp.sum(h_stat, axis=0, keepdims=True) / n
        var = jnp.maximum(jnp.sum(h_stat * h_stat, axis=0, keepdims=True) / n - mu * mu, 0.0)
        scale = gamma * jax.lax.rsqrt(var + BN_EPS)
        shift = beta - mu * scale
        w_f = (w * jnp.transpose(scale)).astype(jnp.bfloat16)
        b_f = b + shift @ w
        a = jnp.dot(h_in.astype(jnp.bfloat16), w_f,
                    preferred_element_type=jnp.float32) + b_f
        if blk == 3:
            return jnp.tanh(a).reshape(B, L, HIDDEN[-1]).transpose(0, 2, 1)
        a = jnp.where(a > 0.0, a, LRELU_SLOPE * a)
        h_stat = a
        h_in = a.astype(jnp.bfloat16)


def _reference_pytorch_f32(x, params):
    """Straight f32 port of the PyTorch forward (train-mode BN), loose sanity check."""
    B, L, C = x.shape
    h = x.reshape(B * L, C).astype(jnp.float32)
    for blk in range(4):
        gamma, beta, w, b = params[4 * blk: 4 * blk + 4]
        mu = jnp.mean(h, axis=0, keepdims=True)
        var = jnp.mean((h - mu) ** 2, axis=0, keepdims=True)
        h = (h - mu) * jax.lax.rsqrt(var + BN_EPS) * gamma + beta
        h = h @ w + b
        h = jnp.tanh(h) if blk == 3 else jnp.where(h > 0, h, LRELU_SLOPE * h)
    return h.reshape(B, L, HIDDEN[-1]).transpose(0, 2, 1)


if __name__ == "__main__":
    key = jax.random.PRNGKey(0)
    kx, kp = jax.random.split(key)

    B, L = 2, 8
    x = jax.random.normal(kx, (B, L, LATENT_DIM), jnp.float32)
    params = init_params(kp)

    out = jax.block_until_ready(simple_conv_gen(x, params))
    assert out.shape == (B, HIDDEN[-1], L), out.shape

    ref = _reference_kernel_algo(x, params)
    assert jnp.allclose(out, ref, atol=2e-3, rtol=2e-3), \
        float(jnp.max(jnp.abs(out - ref)))

    ref32 = _reference_pytorch_f32(x, params)
    assert jnp.allclose(out, ref32, atol=2e-1, rtol=0.0), \
        float(jnp.max(jnp.abs(out - ref32)))

    print("KERNEL_OK")
</pallas_src>

<mosaic_0001>
module attributes {stable_mosaic.version = 11 : i64} {
  func.func @_input_stats_kernel(%arg0: i32, %arg1: memref<16x32xf32, #tpu.memory_space<vmem>>, %arg2: memref<1x32xf32, #tpu.memory_space<vmem>>, %arg3: memref<1x32xf32, #tpu.memory_space<vmem>>) attributes {dimension_semantics = [#tpu.dimension_semantics<arbitrary>], iteration_bounds = array<i64: 1>, scalar_prefetch = 0 : i64, scratch_operands = 0 : i64, tpu.core_type = #tpu.core_type<tc>, window_params = [{transform_indices = @transform_0, window_bounds = array<i64: 16, 32>}, {pipeline_mode = #tpu.pipeline_mode<synchronous>, transform_indices = @transform_1, window_bounds = array<i64: 1, 32>}, {pipeline_mode = #tpu.pipeline_mode<synchronous>, transform_indices = @transform_2, window_bounds = array<i64: 1, 32>}]} {
    %c0_i32 = arith.constant 0 : i32
    %0 = arith.cmpi eq, %arg0, %c0_i32 : i32
    %1 = arith.extui %0 : i1 to i32
    %c0_i32_0 = arith.constant 0 : i32
    %2 = arith.cmpi ne, %1, %c0_i32_0 : i32
    scf.if %2 {
      %cst_11 = arith.constant 0.000000e+00 : f32
      %15 = vector.broadcast %cst_11 : f32 to vector<1x32xf32>
      %c0_12 = arith.constant 0 : index
      %c0_13 = arith.constant 0 : index
      %16 = vector.load %arg2[%c0_12, %c0_13] : memref<1x32xf32, #tpu.memory_space<vmem>>, vector<1x32xf32>
      tpu.vector_store %arg2[%c0_12, %c0_13], %15 {strides = array<i32>} : memref<1x32xf32, #tpu.memory_space<vmem>>, vector<1x32xf32>,
      %cst_14 = arith.constant 0.000000e+00 : f32
      %17 = vector.broadcast %cst_14 : f32 to vector<1x32xf32>
      %c0_15 = arith.constant 0 : index
      %c0_16 = arith.constant 0 : index
      %18 = vector.load %arg3[%c0_15, %c0_16] : memref<1x32xf32, #tpu.memory_space<vmem>>, vector<1x32xf32>
      tpu.vector_store %arg3[%c0_15, %c0_16], %17 {strides = array<i32>} : memref<1x32xf32, #tpu.memory_space<vmem>>, vector<1x32xf32>,
    } else {
    }
    %c0 = arith.constant 0 : index
    %c0_1 = arith.constant 0 : index
    %3 = vector.load %arg1[%c0, %c0_1] : memref<16x32xf32, #tpu.memory_space<vmem>>, vector<16x32xf32>
    %c0_2 = arith.constant 0 : index
    %c0_3 = arith.constant 0 : index
    %4 = vector.load %arg2[%c0_2, %c0_3] : memref<1x32xf32, #tpu.memory_space<vmem>>, vector<1x32xf32>
    %cst = arith.constant dense<0.000000e+00> : vector<32xf32>
    %5 = vector.multi_reduction <add>, %3, %cst [0] : vector<16x32xf32> to vector<32xf32>
    %6 = vector.shape_cast %5 : vector<32xf32> to vector<1x32xf32>
    %7 = arith.addf %4, %6 : vector<1x32xf32>
    %c0_4 = arith.constant 0 : index
    %c0_5 = arith.constant 0 : index
    %8 = vector.load %arg2[%c0_4, %c0_5] : memref<1x32xf32, #tpu.memory_space<vmem>>, vector<1x32xf32>
    tpu.vector_store %arg2[%c0_4, %c0_5], %7 {strides = array<i32>} : memref<1x32xf32, #tpu.memory_space<vmem>>, vector<1x32xf32>,
    %c0_6 = arith.constant 0 : index
    %c0_7 = arith.constant 0 : index
    %9 = vector.load %arg3[%c0_6, %c0_7] : memref<1x32xf32, #tpu.memory_space<vmem>>, vector<1x32xf32>
    %10 = arith.mulf %3, %3 : vector<16x32xf32>
    %cst_8 = arith.constant dense<0.000000e+00> : vector<32xf32>
    %11 = vector.multi_reduction <add>, %10, %cst_8 [0] : vector<16x32xf32> to vector<32xf32>
    %12 = vector.shape_cast %11 : vector<32xf32> to vector<1x32xf32>
    %13 = arith.addf %9, %12 : vector<1x32xf32>
    %c0_9 = arith.constant 0 : index
    %c0_10 = arith.constant 0 : index
    %14 = vector.load %arg3[%c0_9, %c0_10] : memref<1x32xf32, #tpu.memory_space<vmem>>, vector<1x32xf32>
    tpu.vector_store %arg3[%c0_9, %c0_10], %13 {strides = array<i32>} : memref<1x32xf32, #tpu.memory_space<vmem>>, vector<1x32xf32>,
    return
  }
  func.func @transform_0(%arg0: i32) -> (i32, i32) {
    %c0_i32 = arith.constant 0 : i32
    %c0_i32_0 = arith.constant 0 : i32
    return %arg0, %c0_i32 : i32, i32
  }
  func.func @transform_1(%arg0: i32) -> (i32, i32) {
    %c0_i32 = arith.constant 0 : i32
    %c0_i32_0 = arith.constant 0 : i32
    %c0_i32_1 = arith.constant 0 : i32
    return %c0_i32, %c0_i32_0 : i32, i32
  }
  func.func @transform_2(%arg0: i32) -> (i32, i32) {
    %c0_i32 = arith.constant 0 : i32
    %c0_i32_0 = arith.constant 0 : i32
    %c0_i32_1 = arith.constant 0 : i32
    return %c0_i32, %c0_i32_0 : i32, i32
  }
}

</mosaic_0001>

<llo_original>
// kernel: tpu_custom_call.1
$region0: #{tpu_custom_call.1}
  #allocation0 [shape = 'u32[]', space=smem, size = 0x4, offset = 0x4, fixed_abs, tag = 'smem constant byte address 0x4 - core index']
  #allocation1 [shape = 'u32[144,128]{1,0:T(1,128)}', space=vmem, size = 0x12000, scoped, tag = 'internal scratch']
  %s0 = inlined_call_operand.hbm [shape: f32[16,32], index: 0, kind: input, shape index: {}]
  %s1 = inlined_call_operand.hbm [shape: f32[1,32], index: 1, kind: output, shape index: {0}]
  %s2 = inlined_call_operand.hbm [shape: f32[1,32], index: 2, kind: output, shape index: {1}]
  %3 = xla_tuple %s1, %s2
  %s4 = sld [smem:[#allocation0]]
  $region30: #{tpu_custom_call.1} parent=0
    _
  %s6 = ssub.s32 1, %s4
  %s7 = scalar_select 0, %s6, %s4
  $region1: #{tpu_custom_call.1} parent=0
    #allocation2 [shape = 'u8[8192]{0}', space=vmem, size = 0x2000, scoped, tag = 'input window, operand 0, single buffered']
    #allocation3 [shape = 's32[1]{0}', space=sflag, size = 0x4, scoped, tag = 'scoped memory for tpu_custom_call.1']
    #allocation4 [shape = 's32[1]{0}', space=sflag, size = 0x4, scoped, tag = 'scoped memory for tpu_custom_call.1']
    #allocation5 [shape = 'u8[512]{0}', space=vmem, size = 0x400, scoped, tag = 'output window, operand 0, single buffered']
    #allocation6 [shape = 'u8[512]{0}', space=vmem, size = 0x400, scoped, tag = 'output window, operand 1, single buffered']
    #allocation7 [shape = 's32[1]{0}', space=sflag, size = 0x4, scoped, tag = 'scoped memory for tpu_custom_call.1']
    %8 = vsyncpa [#allocation3], 0
    %9 = vsyncpa [#allocation4], 0
    %10 = vsyncpa [#allocation7], 0
    // Predicated region
    $region2: #{tpu_custom_call.1} parent=1 // pred_check
      _
    $region3: #{tpu_custom_call.1} parent=1 // pred_check_branch
      %12 = sbr.rel (0) target = $region5
    $region4: #{tpu_custom_call.1} parent=1 // pred_region
      %s14 = ssub.s32 256, 256
      %15 = vsyncadd [#allocation3], %s14
      %s16 = sshll.u32 [#allocation2], 4
      %s17 = int_to_ptr.vmem [resolvable:$true] %s16
      %22 = dma.hbm_to_vmem [thread:$0]  %s0, 256, %s17, [#allocation3], 128, 128, 8
    $region5: #{tpu_custom_call.1} parent=1 // pred_fallthru
      _
    // Predicated region
    $region6: #{tpu_custom_call.1} parent=1 // pred_check
      _
    $region7: #{tpu_custom_call.1} parent=1 // pred_check_branch
      %24 = sbr.rel (0) target = $region9
    $region8: #{tpu_custom_call.1} parent=1 // pred_region
      %25 = dma.done [#allocation3], 256
    $region9: #{tpu_custom_call.1} parent=1 // pred_fallthru
      _
    %p26 = scmp.eq.s32.totalorder 0, 0
    // Predicated region
    $region10: #{tpu_custom_call.1} parent=1 // pred_check
      %p27 = pneg %p26
    $region11: #{tpu_custom_call.1} parent=1 // pred_check_branch
      %29 = sbr.rel (%p27) target = $region13
    $region12: #{tpu_custom_call.1} parent=1 // pred_region
      %vm30 = vcmask 253952
      %31 = vst.msk [vmem:[#allocation5] sm:$0x1] %vm30, 0.0
      %32 = vst.msk [vmem:[#allocation6] sm:$0x1] %vm30, 0.0
    $region13: #{tpu_custom_call.1} parent=1 // pred_fallthru
      _
    %v33 = vld [vmem:[#allocation2] sm:$0xff]
    %v34 = vld [vmem:[#allocation2 + $0x8] sm:$0xff]
    %v35 = vld [vmem:[#allocation5] sm:$0x1]
    %vm36 = vcmask 261120
    %v37 = vsel %vm36, %v33, 0.0
    %v38 = vsel %vm36, %v34, 0.0
    %v39 = vadd.f32 %v37, %v38
    %v40 = vrot.slane %v39, 4
    %v41 = vadd.f32 %v39, %v40
    %v42 = vrot.slane %v41, 2
    %v43 = vadd.f32 %v41, %v42
    %v44 = vrot.slane %v43, 1
    %v45 = vadd.f32 %v43, %v44
    %v46 = vadd.f32 %v35, %v45
    %vm47 = vcmask 253952
    %48 = vst.msk [vmem:[#allocation5] sm:$0x1] %vm47, %v46
    %v49 = vld [vmem:[#allocation6] sm:$0x1]
    %v50 = vmul.f32 %v33, %v33
    %v51 = vmul.f32 %v34, %v34
    %v52 = vsel %vm36, %v50, 0.0
    %v53 = vsel %vm36, %v51, 0.0
    %v54 = vadd.f32 %v52, %v53
    %v55 = vrot.slane %v54, 4
    %v56 = vadd.f32 %v54, %v55
    %v57 = vrot.slane %v56, 2
    %v58 = vadd.f32 %v56, %v57
    %v59 = vrot.slane %v58, 1
    %v60 = vadd.f32 %v58, %v59
    %v61 = vadd.f32 %v49, %v60
    %62 = vst.msk [vmem:[#allocation6] sm:$0x1] %vm47, %v61
    // Predicated region
    $region14: #{tpu_custom_call.1} parent=1 // pred_check
      _
    $region15: #{tpu_custom_call.1} parent=1 // pred_check_branch
      %64 = sbr.rel (0) target = $region17
    $region16: #{tpu_custom_call.1} parent=1 // pred_region
      %s66 = ssub.s32 16, 16
      %67 = vsyncadd [#allocation4], %s66
      %s69 = sshll.u32 [#allocation5], 4
      %s70 = int_to_ptr.vmem [resolvable:$true] %s69
      %72 = dma.vmem_to_hbm [thread:$0]  %s70, 16, %s1, [#allocation4]
    $region17: #{tpu_custom_call.1} parent=1 // pred_fallthru
      _
    // Predicated region
    $region18: #{tpu_custom_call.1} parent=1 // pred_check
      _
    $region19: #{tpu_custom_call.1} parent=1 // pred_check_branch
      %74 = sbr.rel (0) target = $region21
    $region20: #{tpu_custom_call.1} parent=1 // pred_region
      %s76 = ssub.s32 16, 16
      %77 = vsyncadd [#allocation7], %s76
      %s79 = sshll.u32 [#allocation6], 4
      %s80 = int_to_ptr.vmem [resolvable:$true] %s79
      %82 = dma.vmem_to_hbm [thread:$0]  %s80, 16, %s2, [#allocation7]
    $region21: #{tpu_custom_call.1} parent=1 // pred_fallthru
      _
    // Predicated region
    $region22: #{tpu_custom_call.1} parent=1 // pred_check
      _
    $region23: #{tpu_custom_call.1} parent=1 // pred_check_branch
      %84 = sbr.rel (0) target = $region25
    $region24: #{tpu_custom_call.1} parent=1 // pred_region
      %85 = dma.done [#allocation4], 16
    $region25: #{tpu_custom_call.1} parent=1 // pred_fallthru
      _
    // Predicated region
    $region26: #{tpu_custom_call.1} parent=1 // pred_check
      _
    $region27: #{tpu_custom_call.1} parent=1 // pred_check_branch
      %87 = sbr.rel (0) target = $region29
    $region28: #{tpu_custom_call.1} parent=1 // pred_region
      %88 = dma.done [#allocation7], 16
    $region29: #{tpu_custom_call.1} parent=1 // pred_fallthru
      _
    %89 = vsyncpa [#allocation3], 1
    %90 = vsyncpa [#allocation4], 1
    %91 = vsyncpa [#allocation7], 1

</llo_original>
